<compile_context>
chip_gen: v6e
topology: v6e:2x2x1
jax: 0.10.0
libtpu: 0.0.40
codegen_flags: <defaults>
</compile_context>

<pallas_src>
import functools

import numpy as np
import jax
import jax.numpy as jnp
from jax.experimental import pallas as pl
from jax.experimental.pallas import tpu as pltpu


def _round_up(x, m):
    return ((x + m - 1) // m) * m


# --------------------------------- kernel ------------------------------------

def _conv_bn_lrelu_kernel(x_ref, w_ref, b_ref, o_ref, *,
                          k, stride, dilation, tr, wout_t):
    """One grid step: `tr` output rows of one image, all output columns/channels.

    x_ref: (H_in, W_in, Cin)   bf16  whole padded image (VMEM-resident across steps)
    w_ref: (k*k, Cin, Cout)    bf16  BN-scale-folded per-tap weight matrices
    b_ref: (1, Cout)           f32   folded conv-bias / BN shift
    o_ref: (tr, wout_t, Cout)  f32   output block
    """
    r = pl.program_id(1)
    row_base = r * tr                                  # first output row of block

    # Hoist small loop-invariant operands out of the row loop.
    w_taps = [w_ref[t] for t in range(k * k)]          # each (Cin, Cout) bf16
    shift = b_ref[...]                                 # (1, Cout) f32

    def row_body(i, carry):
        in_row0 = (row_base + i) * stride              # top input row of this output row
        acc = jnp.zeros(o_ref.shape[1:], jnp.float32)  # (wout_t, Cout) f32
        for kh in range(k):                            # k*k taps, statically unrolled
            for kw in range(k):
                row = in_row0 + kh * dilation
                if stride == 1:
                    xs = x_ref[row, pl.ds(kw * dilation, wout_t), :]
                else:
                    xs = x_ref[row, pl.ds(kw * dilation, wout_t, stride), :]
                acc = acc + jnp.dot(xs, w_taps[kh * k + kw],
                                    preferred_element_type=jnp.float32)
        y = acc + shift                                # folded bias / BN shift (f32)
        o_ref[i] = jnp.where(y > 0.0, y, 0.1 * y).astype(o_ref.dtype)
        return carry

    jax.lax.fori_loop(0, tr, row_body, 0)


# --------------------------------- wrapper -----------------------------------

class Conv2DBatchNormReluPallas:
    """Pallas port of conv2DBatchNormRelu (inference-mode BatchNorm)."""

    def __init__(self, in_channels, n_filters, k_size, stride, padding,
                 bias=True, dilation=1, with_bn=True, *, key, eps=1e-5):
        self.in_channels = int(in_channels)
        self.n_filters = int(n_filters)
        self.k_size = int(k_size)
        self.stride = int(stride)
        self.padding = int(padding)
        self.dilation = int(dilation)
        self.with_bn = bool(with_bn)
        self.has_bias = bool(bias)
        self.eps = float(eps)

        kw, kb, kg, kbe, km, kv = jax.random.split(key, 6)
        fan_in = self.in_channels * self.k_size * self.k_size
        bound = 1.0 / np.sqrt(fan_in)
        # PyTorch-like Conv2d init
        self.w = jax.random.uniform(
            kw, (self.n_filters, self.in_channels, self.k_size, self.k_size),
            jnp.float32, -bound, bound)
        self.b = (jax.random.uniform(kb, (self.n_filters,), jnp.float32,
                                     -bound, bound)
                  if self.has_bias else None)
        # BatchNorm parameters / running stats (randomized so the fold is exercised)
        self.gamma = 1.0 + 0.1 * jax.random.normal(kg, (self.n_filters,), jnp.float32)
        self.beta = 0.1 * jax.random.normal(kbe, (self.n_filters,), jnp.float32)
        self.r_mean = 0.1 * jax.random.normal(km, (self.n_filters,), jnp.float32)
        self.r_var = jnp.abs(1.0 + 0.1 * jax.random.normal(kv, (self.n_filters,),
                                                           jnp.float32))

        # Fold BN + conv bias into (per-tap weight, per-channel shift), ONCE.
        if self.with_bn:
            scale = self.gamma / jnp.sqrt(self.r_var + self.eps)
            shift = self.beta - self.r_mean * scale
        else:
            scale = jnp.ones((self.n_filters,), jnp.float32)
            shift = jnp.zeros((self.n_filters,), jnp.float32)
        if self.has_bias:
            shift = shift + self.b * scale
        w_folded = self.w * scale[:, None, None, None]            # (Cout,Cin,k,k) f32
        # Per-tap (Cin, Cout) matrices, streamed in bf16 (cast once here).
        self.w_taps = jnp.transpose(w_folded, (2, 3, 1, 0)).reshape(
            self.k_size * self.k_size, self.in_channels, self.n_filters
        ).astype(jnp.bfloat16)                                    # (k*k,Cin,Cout) bf16
        self.shift_row = shift.reshape(1, -1)                     # (1,Cout) f32
        self._shift = shift

    # ---- pure-JAX references (correctness checks only) ----
    def reference(self, x):
        """Full-precision reference of the original module (inference-mode BN)."""
        dn = jax.lax.conv_dimension_numbers(
            x.shape, self.w.shape, ("NCHW", "OIHW", "NCHW"))
        y = jax.lax.conv_general_dilated(
            x.astype(jnp.float32), self.w,
            window_strides=(self.stride, self.stride),
            padding=[(self.padding, self.padding)] * 2,
            rhs_dilation=(self.dilation, self.dilation),
            dimension_numbers=dn, precision=jax.lax.Precision.HIGHEST)
        if self.has_bias:
            y = y + self.b.reshape(1, -1, 1, 1)
        if self.with_bn:
            y = ((y - self.r_mean.reshape(1, -1, 1, 1))
                 / jnp.sqrt(self.r_var.reshape(1, -1, 1, 1) + self.eps)
                 * self.gamma.reshape(1, -1, 1, 1)
                 + self.beta.reshape(1, -1, 1, 1))
        return jnp.where(y > 0.0, y, 0.1 * y)

    def reference_quantized(self, x):
        """Reference using the same bf16 operand quantization as the kernel."""
        k = self.k_size
        wq = jnp.transpose(
            self.w_taps.astype(jnp.float32).reshape(k, k, self.in_channels,
                                                    self.n_filters),
            (3, 2, 0, 1))                                          # (Cout,Cin,k,k)
        xq = x.astype(jnp.bfloat16).astype(jnp.float32)
        dn = jax.lax.conv_dimension_numbers(
            xq.shape, wq.shape, ("NCHW", "OIHW", "NCHW"))
        y = jax.lax.conv_general_dilated(
            xq, wq, window_strides=(self.stride, self.stride),
            padding=[(self.padding, self.padding)] * 2,
            rhs_dilation=(self.dilation, self.dilation),
            dimension_numbers=dn, precision=jax.lax.Precision.HIGHEST)
        y = y + self._shift.reshape(1, -1, 1, 1)
        return jnp.where(y > 0.0, y, 0.1 * y)

    # ---- Pallas forward ----
    def __call__(self, x):
        n, c, h, w = x.shape
        assert c == self.in_channels
        k, s, p, d = self.k_size, self.stride, self.padding, self.dilation
        cin, cout = self.in_channels, self.n_filters

        hout = (h + 2 * p - d * (k - 1) - 1) // s + 1
        wout = (w + 2 * p - d * (k - 1) - 1) // s + 1

        # Tile geometry: `tr` output rows x all output columns per grid step.
        wout_t = _round_up(wout, 8)                  # unmasked f32 sublane stores
        tr = max(1, min(32, -(-hout // 2)))          # >=2 row blocks whenever hout>=2
        nrb = -(-hout // tr)                         # row blocks per image
        hout_t = nrb * tr

        # Padded input extents actually touched by the kernel (covers halo + tail).
        h_in = max(h + 2 * p, (hout_t - 1) * s + (k - 1) * d + 1)
        w_in = max(w + 2 * p, (wout_t - 1) * s + (k - 1) * d + 1)

        # Stream the input once: bf16, NHWC (channels on lanes), spatial halo pad.
        x_nhwc = jnp.transpose(x.astype(jnp.bfloat16), (0, 2, 3, 1))
        x_p = jnp.pad(x_nhwc,
                      ((0, 0), (p, h_in - h - p), (p, w_in - w - p), (0, 0)))

        kernel = functools.partial(_conv_bn_lrelu_kernel, k=k, stride=s,
                                   dilation=d, tr=tr, wout_t=wout_t)

        flops = 2 * n * hout * wout * cout * cin * k * k
        bytes_accessed = (x_p.size * 2 + self.w_taps.size * 2
                          + self.shift_row.size * 4
                          + n * hout_t * wout_t * cout * 4)
        # Rough per-step VMEM footprint (double-buffered, lane/sublane-padded).
        vmem_est = 2 * (h_in * _round_up(w_in, 16) * _round_up(cin, 128) * 2
                        + k * k * _round_up(cin, 16) * _round_up(cout, 128) * 2
                        + tr * wout_t * _round_up(cout, 128) * 4)
        vmem_limit = int(min(64 * 2 ** 20, max(32 * 2 ** 20, 2 * vmem_est)))

        out = pl.pallas_call(
            kernel,
            out_shape=jax.ShapeDtypeStruct((n, hout_t, wout_t, cout), jnp.float32),
            grid=(n, nrb),
            in_specs=[
                # Whole padded image; index_map is constant along the row axis so
                # the image is DMA'd once per image and stays resident across blocks.
                pl.BlockSpec((None, h_in, w_in, cin), lambda ni, ri: (ni, 0, 0, 0)),
                pl.BlockSpec((k * k, cin, cout), lambda ni, ri: (0, 0, 0)),
                pl.BlockSpec((1, cout), lambda ni, ri: (0, 0)),
            ],
            out_specs=pl.BlockSpec((None, tr, wout_t, cout),
                                   lambda ni, ri: (ni, ri, 0, 0)),
            compiler_params=pltpu.CompilerParams(
                dimension_semantics=("parallel", "arbitrary"),
                vmem_limit_bytes=vmem_limit),
            cost_estimate=pl.CostEstimate(flops=flops, transcendentals=0,
                                          bytes_accessed=bytes_accessed),
        )(x_p, self.w_taps, self.shift_row)

        out = out[:, :hout, :wout, :]                 # strip row/col padding
        return jnp.transpose(out, (0, 3, 1, 2))       # NHWC -> NCHW (f32)


if __name__ == "__main__":
    key = jax.random.PRNGKey(0)
    kx, kp = jax.random.split(key)
    N, Cin, Cout, H, W = 2, 4, 8, 16, 16
    x = jax.random.normal(kx, (N, Cin, H, W), jnp.float32)

    model = Conv2DBatchNormReluPallas(Cin, Cout, k_size=3, stride=1, padding=1,
                                      bias=True, dilation=1, with_bn=True, key=kp)
    out = jax.block_until_ready(jax.jit(lambda v: model(v))(x))

    assert out.shape == (N, Cout, H, W)
    assert bool(jnp.all(jnp.isfinite(out)))

    # Exact-math check vs a reference using the same bf16 operand quantization.
    ref_q = jax.block_until_ready(model.reference_quantized(x))
    err_q = float(jnp.max(jnp.abs(out - ref_q)))
    assert err_q < 1e-3, f"max abs error vs quantized ref {err_q}"

    # Loose check vs the full-precision module semantics (bf16 streaming tolerance).
    ref = jax.block_until_ready(model.reference(x))
    err = float(jnp.max(jnp.abs(out - ref)))
    assert err < 5e-2, f"max abs error vs full-precision ref {err}"

    print("KERNEL_OK")
</pallas_src>

<mosaic_0001>
module attributes {stable_mosaic.version = 11 : i64} {
  func.func @_conv_bn_lrelu_kernel(%arg0: i32, %arg1: i32, %arg2: memref<1x18x18x4xbf16, #tpu.memory_space<vmem>>, %arg3: memref<9x4x8xbf16, #tpu.memory_space<vmem>>, %arg4: memref<1x8xf32, #tpu.memory_space<vmem>>, %arg5: memref<1x8x16x8xf32, #tpu.memory_space<vmem>>) attributes {dimension_semantics = [#tpu.dimension_semantics<parallel>, #tpu.dimension_semantics<arbitrary>], iteration_bounds = array<i64: 2, 2>, scalar_prefetch = 0 : i64, scratch_operands = 0 : i64, tpu.core_type = #tpu.core_type<tc>, window_params = [{transform_indices = @transform_0, window_bounds = array<i64: 1, 18, 18, 4>}, {pipeline_mode = #tpu.pipeline_mode<synchronous>, transform_indices = @transform_1, window_bounds = array<i64: 9, 4, 8>}, {pipeline_mode = #tpu.pipeline_mode<synchronous>, transform_indices = @transform_2, window_bounds = array<i64: 1, 8>}, {transform_indices = @transform_3, window_bounds = array<i64: 1, 8, 16, 8>}]} {
    %c8_i32 = arith.constant 8 : i32
    %0 = arith.muli %arg1, %c8_i32 : i32
    %c0 = arith.constant 0 : index
    %c0_0 = arith.constant 0 : index
    %c0_1 = arith.constant 0 : index
    %1 = vector.load %arg3[%c0, %c0_0, %c0_1] : memref<9x4x8xbf16, #tpu.memory_space<vmem>>, vector<1x4x8xbf16>
    %2 = vector.shape_cast %1 : vector<1x4x8xbf16> to vector<4x8xbf16>
    %c1 = arith.constant 1 : index
    %c0_2 = arith.constant 0 : index
    %c0_3 = arith.constant 0 : index
    %3 = vector.load %arg3[%c1, %c0_2, %c0_3] : memref<9x4x8xbf16, #tpu.memory_space<vmem>>, vector<1x4x8xbf16>
    %4 = vector.shape_cast %3 : vector<1x4x8xbf16> to vector<4x8xbf16>
    %c2 = arith.constant 2 : index
    %c0_4 = arith.constant 0 : index
    %c0_5 = arith.constant 0 : index
    %5 = vector.load %arg3[%c2, %c0_4, %c0_5] : memref<9x4x8xbf16, #tpu.memory_space<vmem>>, vector<1x4x8xbf16>
    %6 = vector.shape_cast %5 : vector<1x4x8xbf16> to vector<4x8xbf16>
    %c3 = arith.constant 3 : index
    %c0_6 = arith.constant 0 : index
    %c0_7 = arith.constant 0 : index
    %7 = vector.load %arg3[%c3, %c0_6, %c0_7] : memref<9x4x8xbf16, #tpu.memory_space<vmem>>, vector<1x4x8xbf16>
    %8 = vector.shape_cast %7 : vector<1x4x8xbf16> to vector<4x8xbf16>
    %c4 = arith.constant 4 : index
    %c0_8 = arith.constant 0 : index
    %c0_9 = arith.constant 0 : index
    %9 = vector.load %arg3[%c4, %c0_8, %c0_9] : memref<9x4x8xbf16, #tpu.memory_space<vmem>>, vector<1x4x8xbf16>
    %10 = vector.shape_cast %9 : vector<1x4x8xbf16> to vector<4x8xbf16>
    %c5 = arith.constant 5 : index
    %c0_10 = arith.constant 0 : index
    %c0_11 = arith.constant 0 : index
    %11 = vector.load %arg3[%c5, %c0_10, %c0_11] : memref<9x4x8xbf16, #tpu.memory_space<vmem>>, vector<1x4x8xbf16>
    %12 = vector.shape_cast %11 : vector<1x4x8xbf16> to vector<4x8xbf16>
    %c6 = arith.constant 6 : index
    %c0_12 = arith.constant 0 : index
    %c0_13 = arith.constant 0 : index
    %13 = vector.load %arg3[%c6, %c0_12, %c0_13] : memref<9x4x8xbf16, #tpu.memory_space<vmem>>, vector<1x4x8xbf16>
    %14 = vector.shape_cast %13 : vector<1x4x8xbf16> to vector<4x8xbf16>
    %c7 = arith.constant 7 : index
    %c0_14 = arith.constant 0 : index
    %c0_15 = arith.constant 0 : index
    %15 = vector.load %arg3[%c7, %c0_14, %c0_15] : memref<9x4x8xbf16, #tpu.memory_space<vmem>>, vector<1x4x8xbf16>
    %16 = vector.shape_cast %15 : vector<1x4x8xbf16> to vector<4x8xbf16>
    %c8 = arith.constant 8 : index
    %c0_16 = arith.constant 0 : index
    %c0_17 = arith.constant 0 : index
    %17 = vector.load %arg3[%c8, %c0_16, %c0_17] : memref<9x4x8xbf16, #tpu.memory_space<vmem>>, vector<1x4x8xbf16>
    %18 = vector.shape_cast %17 : vector<1x4x8xbf16> to vector<4x8xbf16>
    %c0_18 = arith.constant 0 : index
    %c0_19 = arith.constant 0 : index
    %19 = vector.load %arg4[%c0_18, %c0_19] : memref<1x8xf32, #tpu.memory_space<vmem>>, vector<1x8xf32>
    %c0_i32 = arith.constant 0 : i32
    %c8_i32_20 = arith.constant 8 : i32
    %20 = arith.addi %c0_i32, %c8_i32_20 : i32
    %c1_i32 = arith.constant 1 : i32
    scf.for %arg6 = %c0_i32 to %20 step %c1_i32  : i32 {
      %21 = arith.addi %0, %arg6 : i32
      %c1_i32_22 = arith.constant 1 : i32
      %22 = arith.muli %21, %c1_i32_22 : i32
      %cst = arith.constant 0.000000e+00 : f32
      %23 = vector.broadcast %cst : f32 to vector<16x8xf32>
      %c0_i32_23 = arith.constant 0 : i32
      %24 = arith.addi %22, %c0_i32_23 : i32
      %c0_24 = arith.constant 0 : index
      %25 = arith.index_cast %24 : i32 to index
      %c0_25 = arith.constant 0 : index
      %c0_26 = arith.constant 0 : index
      %26 = vector.load %arg2[%c0_24, %25, %c0_25, %c0_26] : memref<1x18x18x4xbf16, #tpu.memory_space<vmem>>, vector<1x1x16x4xbf16>
      %27 = vector.shape_cast %26 : vector<1x1x16x4xbf16> to vector<16x4xbf16>
      %cst_27 = arith.constant dense<0.000000e+00> : vector<16x8xf32>
      %28 = tpu.matmul %27, %2, %cst_27 {dimension_numbers = #tpu.dot_dimension_numbers<[1], [0], [0], [1], [0, 0, 1, 1], [], []>} : vector<16x4xbf16>, vector<4x8xbf16>, vector<16x8xf32> -> vector<16x8xf32>
      %29 = arith.addf %23, %28 : vector<16x8xf32>
      %c0_i32_28 = arith.constant 0 : i32
      %30 = arith.addi %22, %c0_i32_28 : i32
      %c0_29 = arith.constant 0 : index
      %31 = arith.index_cast %30 : i32 to index
      %c1_30 = arith.constant 1 : index
      %c0_31 = arith.constant 0 : index
      %32 = vector.load %arg2[%c0_29, %31, %c1_30, %c0_31] : memref<1x18x18x4xbf16, #tpu.memory_space<vmem>>, vector<1x1x16x4xbf16>
      %33 = vector.shape_cast %32 : vector<1x1x16x4xbf16> to vector<16x4xbf16>
      %cst_32 = arith.constant dense<0.000000e+00> : vector<16x8xf32>
      %34 = tpu.matmul %33, %4, %cst_32 {dimension_numbers = #tpu.dot_dimension_numbers<[1], [0], [0], [1], [0, 0, 1, 1], [], []>} : vector<16x4xbf16>, vector<4x8xbf16>, vector<16x8xf32> -> vector<16x8xf32>
      %35 = arith.addf %29, %34 : vector<16x8xf32>
      %c0_i32_33 = arith.constant 0 : i32
      %36 = arith.addi %22, %c0_i32_33 : i32
      %c0_34 = arith.constant 0 : index
      %37 = arith.index_cast %36 : i32 to index
      %c2_35 = arith.constant 2 : index
      %c0_36 = arith.constant 0 : index
      %38 = vector.load %arg2[%c0_34, %37, %c2_35, %c0_36] : memref<1x18x18x4xbf16, #tpu.memory_space<vmem>>, vector<1x1x16x4xbf16>
      %39 = vector.shape_cast %38 : vector<1x1x16x4xbf16> to vector<16x4xbf16>
      %cst_37 = arith.constant dense<0.000000e+00> : vector<16x8xf32>
      %40 = tpu.matmul %39, %6, %cst_37 {dimension_numbers = #tpu.dot_dimension_numbers<[1], [0], [0], [1], [0, 0, 1, 1], [], []>} : vector<16x4xbf16>, vector<4x8xbf16>, vector<16x8xf32> -> vector<16x8xf32>
      %41 = arith.addf %35, %40 : vector<16x8xf32>
      %c1_i32_38 = arith.constant 1 : i32
      %42 = arith.addi %22, %c1_i32_38 : i32
      %c0_39 = arith.constant 0 : index
      %43 = arith.index_cast %42 : i32 to index
      %c0_40 = arith.constant 0 : index
      %c0_41 = arith.constant 0 : index
      %44 = vector.load %arg2[%c0_39, %43, %c0_40, %c0_41] : memref<1x18x18x4xbf16, #tpu.memory_space<vmem>>, vector<1x1x16x4xbf16>
      %45 = vector.shape_cast %44 : vector<1x1x16x4xbf16> to vector<16x4xbf16>
      %cst_42 = arith.constant dense<0.000000e+00> : vector<16x8xf32>
      %46 = tpu.matmul %45, %8, %cst_42 {dimension_numbers = #tpu.dot_dimension_numbers<[1], [0], [0], [1], [0, 0, 1, 1], [], []>} : vector<16x4xbf16>, vector<4x8xbf16>, vector<16x8xf32> -> vector<16x8xf32>
      %47 = arith.addf %41, %46 : vector<16x8xf32>
      %c1_i32_43 = arith.constant 1 : i32
      %48 = arith.addi %22, %c1_i32_43 : i32
      %c0_44 = arith.constant 0 : index
      %49 = arith.index_cast %48 : i32 to index
      %c1_45 = arith.constant 1 : index
      %c0_46 = arith.constant 0 : index
      %50 = vector.load %arg2[%c0_44, %49, %c1_45, %c0_46] : memref<1x18x18x4xbf16, #tpu.memory_space<vmem>>, vector<1x1x16x4xbf16>
      %51 = vector.shape_cast %50 : vector<1x1x16x4xbf16> to vector<16x4xbf16>
      %cst_47 = arith.constant dense<0.000000e+00> : vector<16x8xf32>
      %52 = tpu.matmul %51, %10, %cst_47 {dimension_numbers = #tpu.dot_dimension_numbers<[1], [0], [0], [1], [0, 0, 1, 1], [], []>} : vector<16x4xbf16>, vector<4x8xbf16>, vector<16x8xf32> -> vector<16x8xf32>
      %53 = arith.addf %47, %52 : vector<16x8xf32>
      %c1_i32_48 = arith.constant 1 : i32
      %54 = arith.addi %22, %c1_i32_48 : i32
      %c0_49 = arith.constant 0 : index
      %55 = arith.index_cast %54 : i32 to index
      %c2_50 = arith.constant 2 : index
      %c0_51 = arith.constant 0 : index
      %56 = vector.load %arg2[%c0_49, %55, %c2_50, %c0_51] : memref<1x18x18x4xbf16, #tpu.memory_space<vmem>>, vector<1x1x16x4xbf16>
      %57 = vector.shape_cast %56 : vector<1x1x16x4xbf16> to vector<16x4xbf16>
      %cst_52 = arith.constant dense<0.000000e+00> : vector<16x8xf32>
      %58 = tpu.matmul %57, %12, %cst_52 {dimension_numbers = #tpu.dot_dimension_numbers<[1], [0], [0], [1], [0, 0, 1, 1], [], []>} : vector<16x4xbf16>, vector<4x8xbf16>, vector<16x8xf32> -> vector<16x8xf32>
      %59 = arith.addf %53, %58 : vector<16x8xf32>
      %c2_i32 = arith.constant 2 : i32
      %60 = arith.addi %22, %c2_i32 : i32
      %c0_53 = arith.constant 0 : index
      %61 = arith.index_cast %60 : i32 to index
      %c0_54 = arith.constant 0 : index
      %c0_55 = arith.constant 0 : index
      %62 = vector.load %arg2[%c0_53, %61, %c0_54, %c0_55] : memref<1x18x18x4xbf16, #tpu.memory_space<vmem>>, vector<1x1x16x4xbf16>
      %63 = vector.shape_cast %62 : vector<1x1x16x4xbf16> to vector<16x4xbf16>
      %cst_56 = arith.constant dense<0.000000e+00> : vector<16x8xf32>
      %64 = tpu.matmul %63, %14, %cst_56 {dimension_numbers = #tpu.dot_dimension_numbers<[1], [0], [0], [1], [0, 0, 1, 1], [], []>} : vector<16x4xbf16>, vector<4x8xbf16>, vector<16x8xf32> -> vector<16x8xf32>
      %65 = arith.addf %59, %64 : vector<16x8xf32>
      %c2_i32_57 = arith.constant 2 : i32
      %66 = arith.addi %22, %c2_i32_57 : i32
      %c0_58 = arith.constant 0 : index
      %67 = arith.index_cast %66 : i32 to index
      %c1_59 = arith.constant 1 : index
      %c0_60 = arith.constant 0 : index
      %68 = vector.load %arg2[%c0_58, %67, %c1_59, %c0_60] : memref<1x18x18x4xbf16, #tpu.memory_space<vmem>>, vector<1x1x16x4xbf16>
      %69 = vector.shape_cast %68 : vector<1x1x16x4xbf16> to vector<16x4xbf16>
      %cst_61 = arith.constant dense<0.000000e+00> : vector<16x8xf32>
      %70 = tpu.matmul %69, %16, %cst_61 {dimension_numbers = #tpu.dot_dimension_numbers<[1], [0], [0], [1], [0, 0, 1, 1], [], []>} : vector<16x4xbf16>, vector<4x8xbf16>, vector<16x8xf32> -> vector<16x8xf32>
      %71 = arith.addf %65, %70 : vector<16x8xf32>
      %c2_i32_62 = arith.constant 2 : i32
      %72 = arith.addi %22, %c2_i32_62 : i32
      %c0_63 = arith.constant 0 : index
      %73 = arith.index_cast %72 : i32 to index
      %c2_64 = arith.constant 2 : index
      %c0_65 = arith.constant 0 : index
      %74 = vector.load %arg2[%c0_63, %73, %c2_64, %c0_65] : memref<1x18x18x4xbf16, #tpu.memory_space<vmem>>, vector<1x1x16x4xbf16>
      %75 = vector.shape_cast %74 : vector<1x1x16x4xbf16> to vector<16x4xbf16>
      %cst_66 = arith.constant dense<0.000000e+00> : vector<16x8xf32>
      %76 = tpu.matmul %75, %18, %cst_66 {dimension_numbers = #tpu.dot_dimension_numbers<[1], [0], [0], [1], [0, 0, 1, 1], [], []>} : vector<16x4xbf16>, vector<4x8xbf16>, vector<16x8xf32> -> vector<16x8xf32>
      %77 = arith.addf %71, %76 : vector<16x8xf32>
      %78 = vector.broadcast %19 : vector<1x8xf32> to vector<16x8xf32>
      %79 = arith.addf %77, %78 : vector<16x8xf32>
      %cst_67 = arith.constant 0.000000e+00 : f32
      %80 = vector.broadcast %cst_67 : f32 to vector<16x8xf32>
      %81 = arith.cmpf ogt, %79, %80 : vector<16x8xf32>
      %cst_68 = arith.constant 1.000000e-01 : f32
      %82 = vector.broadcast %cst_68 : f32 to vector<16x8xf32>
      %83 = arith.mulf %82, %79 : vector<16x8xf32>
      %84 = arith.select %81, %79, %83 : vector<16x8xi1>, vector<16x8xf32>
      %c0_69 = arith.constant 0 : index
      %85 = arith.index_cast %arg6 : i32 to index
      %c0_70 = arith.constant 0 : index
      %c0_71 = arith.constant 0 : index
      %86 = vector.load %arg5[%c0_69, %85, %c0_70, %c0_71] : memref<1x8x16x8xf32, #tpu.memory_space<vmem>>, vector<1x1x16x8xf32>
      %87 = vector.shape_cast %86 : vector<1x1x16x8xf32> to vector<16x8xf32>
      %88 = vector.shape_cast %84 : vector<16x8xf32> to vector<1x1x16x8xf32>
      tpu.vector_store %arg5[%c0_69, %85, %c0_70, %c0_71], %88 {strides = array<i32>} : memref<1x8x16x8xf32, #tpu.memory_space<vmem>>, vector<1x1x16x8xf32>,
    }
    %c8_i32_21 = arith.constant 8 : i32
    return
  }
  func.func @transform_0(%arg0: i32, %arg1: i32) -> (i32, i32, i32, i32) {
    %c0_i32 = arith.constant 0 : i32
    %c0_i32_0 = arith.constant 0 : i32
    %c0_i32_1 = arith.constant 0 : i32
    %c0_i32_2 = arith.constant 0 : i32
    return %arg0, %c0_i32, %c0_i32_0, %c0_i32_1 : i32, i32, i32, i32
  }
  func.func @transform_1(%arg0: i32, %arg1: i32) -> (i32, i32, i32) {
    %c0_i32 = arith.constant 0 : i32
    %c0_i32_0 = arith.constant 0 : i32
    %c0_i32_1 = arith.constant 0 : i32
    %c0_i32_2 = arith.constant 0 : i32
    return %c0_i32, %c0_i32_0, %c0_i32_1 : i32, i32, i32
  }
  func.func @transform_2(%arg0: i32, %arg1: i32) -> (i32, i32) {
    %c0_i32 = arith.constant 0 : i32
    %c0_i32_0 = arith.constant 0 : i32
    %c0_i32_1 = arith.constant 0 : i32
    return %c0_i32, %c0_i32_0 : i32, i32
  }
  func.func @transform_3(%arg0: i32, %arg1: i32) -> (i32, i32, i32, i32) {
    %c0_i32 = arith.constant 0 : i32
    %c0_i32_0 = arith.constant 0 : i32
    %c0_i32_1 = arith.constant 0 : i32
    return %arg0, %arg1, %c0_i32, %c0_i32_0 : i32, i32, i32, i32
  }
}

</mosaic_0001>

<llo_original>
// kernel: _lambda_.1
$region0: #{_lambda_.1}
  #allocation0 [shape = 'u32[]', space=smem, size = 0x4, offset = 0x4, fixed_abs, tag = 'smem constant byte address 0x4 - core index']
  #allocation1 [shape = 'u32[144,128]{1,0:T(1,128)}', space=vmem, size = 0x12000, scoped, tag = 'internal scratch']
  %s0 = inlined_call_operand.vmem [shape: bf16[2,18,18,4], index: 0, kind: input, shape index: {}]
  %s1 = inlined_call_operand.vmem [shape: bf16[9,4,8], index: 1, kind: input, shape index: {}]
  %s2 = inlined_call_operand.vmem [shape: f32[1,8], index: 2, kind: input, shape index: {}]
  %s3 = inlined_call_operand.vmem [shape: f32[2,16,16,8], index: 3, kind: output, shape index: {}]
  %s4 = sld [smem:[#allocation0]]
  $region52: #{_lambda_.1} parent=0
    _
  %s6 = ssub.s32 1, %s4
  %s7 = scalar_select 0, %s6, %s4
  loop: start=0, step=1, limit=6
  $region2: #{_lambda_.1} parent=0 // loop_pre_header
    _
  $region3: #{_lambda_.1} parent=0 // loop_header
    %s9 = sphi 0, %s13
    %p10 = scmp.ge.s32.totalorder %s9, 6
    %s16 = sphi 0, %s28
    %s17 = sphi 0, %s24
    %s18 = sphi 0, %s16
    %s19 = sphi 0, %s17
    %s20 = sphi 0, %s18
    %s21 = sphi 0, %s19
    %s31 = sphi 0, %s33
    %s34 = sphi 0, %s31
    %s35 = sphi 0, %s34
    %s51 = sphi 0, %s35
    %s55 = sphi 0, %s55
    %s57 = sphi 0, %s55
    %s58 = sphi 0, %s57
    %s72 = sphi 0, %s58
    %s76 = sphi 0, %s76
    %s78 = sphi 0, %s76
    %s79 = sphi 0, %s78
    %s93 = sphi 0, %s79
    %s101 = sphi 0, %s103
    %s104 = sphi 0, %s101
    %s105 = sphi 0, %s104
    %s121 = sphi 0, %s105
  $region4: #{_lambda_.1} parent=0 // loop_header_branch
    %12 = sbr.rel (%p10) target = $region8
  $region5: #{_lambda_.1} parent=0 // loop_body
    %s14 = ssub.s32 %s9, 1
    %s15 = ssub.s32 %s9, 2
    %s22 = sadd.s32 1, %s17
    %p23 = scmp.ge.s32.totalorder %s22, 2
    %s24 = scalar_select %p23, 0, %s22
    %s25 = sadd.s32 1, %s16
    %s26 = scalar_select %p23, %s25, %s16
    %p27 = scmp.ge.s32.totalorder %s26, 2
    %s28 = scalar_select %p27, 0, %s26
    %s29 = ssub.s32 %s16, %s28
    %p30 = scmp.eq.s32.totalorder %s29, 0
    %s32 = sadd.s32 %s31, 1
    %s33 = scalar_select %p30, %s31, %s32
    %p36 = pneg %p30
    %p37 = scmp.eq.s32.totalorder %s9, 3
    %p38 = por %p36, %p37
    %p39 = scmp.ne.s32.totalorder %s31, %s34
    %p40 = scmp.eq.s32.totalorder %s9, 0
    %p41 = por %p39, %p40
    %p42 = scmp.ne.s32.totalorder %s31, %s34
    %p43 = scmp.eq.s32.totalorder %s14, 3
    %p44 = por %p42, %p43
    %p45 = scmp.ne.s32.totalorder %s34, %s35
    %p46 = scmp.eq.s32.totalorder %s14, 0
    %p47 = por %p45, %p46
    %p48 = scmp.ne.s32.totalorder %s34, %s35
    %p49 = scmp.eq.s32.totalorder %s15, 3
    %p50 = por %p48, %p49
    %p52 = scmp.ne.s32.totalorder %s35, %s51
    %p53 = scmp.eq.s32.totalorder %s15, 0
    %p54 = por %p52, %p53
    %s56 = sadd.s32 %s55, 1
    %p59 = scmp.eq.s32.totalorder %s9, 3
    %p60 = scmp.ne.s32.totalorder %s55, %s57
    %p61 = scmp.eq.s32.totalorder %s9, 0
    %p62 = por %p60, %p61
    %p63 = scmp.ne.s32.totalorder %s55, %s57
    %p64 = scmp.eq.s32.totalorder %s14, 3
    %p65 = por %p63, %p64
    %p66 = scmp.ne.s32.totalorder %s57, %s58
    %p67 = scmp.eq.s32.totalorder %s14, 0
    %p68 = por %p66, %p67
    %p69 = scmp.ne.s32.totalorder %s57, %s58
    %p70 = scmp.eq.s32.totalorder %s15, 3
    %p71 = por %p69, %p70
    %p73 = scmp.ne.s32.totalorder %s58, %s72
    %p74 = scmp.eq.s32.totalorder %s15, 0
    %p75 = por %p73, %p74
    %s77 = sadd.s32 %s76, 1
    %p80 = scmp.eq.s32.totalorder %s9, 3
    %p81 = scmp.ne.s32.totalorder %s76, %s78
    %p82 = scmp.eq.s32.totalorder %s9, 0
    %p83 = por %p81, %p82
    %p84 = scmp.ne.s32.totalorder %s76, %s78
    %p85 = scmp.eq.s32.totalorder %s14, 3
    %p86 = por %p84, %p85
    %p87 = scmp.ne.s32.totalorder %s78, %s79
    %p88 = scmp.eq.s32.totalorder %s14, 0
    %p89 = por %p87, %p88
    %p90 = scmp.ne.s32.totalorder %s78, %s79
    %p91 = scmp.eq.s32.totalorder %s15, 3
    %p92 = por %p90, %p91
    %p94 = scmp.ne.s32.totalorder %s79, %s93
    %p95 = scmp.eq.s32.totalorder %s15, 0
    %p96 = por %p94, %p95
    %s97 = ssub.s32 %s16, %s28
    %s98 = ssub.s32 %s17, %s24
    %s99 = sor.u32 %s97, %s98
    %p100 = scmp.eq.s32.totalorder %s99, 0
    %s102 = sadd.s32 %s101, 1
    %s103 = scalar_select %p100, %s101, %s102
    %p106 = pneg %p100
    %p107 = scmp.eq.s32.totalorder %s9, 3
    %p108 = por %p106, %p107
    %p109 = scmp.ne.s32.totalorder %s101, %s104
    %p110 = scmp.eq.s32.totalorder %s9, 0
    %p111 = por %p109, %p110
    %p112 = scmp.ne.s32.totalorder %s101, %s104
    %p113 = scmp.eq.s32.totalorder %s14, 3
    %p114 = por %p112, %p113
    %p115 = scmp.ne.s32.totalorder %s104, %s105
    %p116 = scmp.eq.s32.totalorder %s14, 0
    %p117 = por %p115, %p116
    %p118 = scmp.ne.s32.totalorder %s104, %s105
    %p119 = scmp.eq.s32.totalorder %s15, 3
    %p120 = por %p118, %p119
    %p122 = scmp.ne.s32.totalorder %s105, %s121
    %p123 = scmp.eq.s32.totalorder %s15, 0
    %p124 = por %p122, %p123
    %p125 = scmp.le.s32.totalorder 1, %s9
    %p126 = scmp.lt.s32.totalorder %s9, 5
    %p127 = pnand %p125, %p126
    %p128 = pneg %p127
    // Predicated region
    $region9: #{_lambda_.1} parent=5 // pred_check
      _
    $region10: #{_lambda_.1} parent=5 // pred_check_branch
      %130 = sbr.rel (%p127) target = $region12
    $region11: #{_lambda_.1} parent=5 // pred_region
      %s131 = ssub.s32 %s9, 1
      // Predicated region
      $region13: #{_lambda_.1} parent=11 // pred_check
        %p132 = pneg %p68
      $region14: #{_lambda_.1} parent=11 // pred_check_branch
        %134 = sbr.rel (%p132) target = $region16
      $region15: #{_lambda_.1} parent=11 // pred_region
        _
      $region16: #{_lambda_.1} parent=11 // pred_fallthru
        _
      // Predicated region
      $region17: #{_lambda_.1} parent=11 // pred_check
        %p135 = pneg %p89
      $region18: #{_lambda_.1} parent=11 // pred_check_branch
        %137 = sbr.rel (%p135) target = $region20
      $region19: #{_lambda_.1} parent=11 // pred_region
        _
      $region20: #{_lambda_.1} parent=11 // pred_fallthru
        _
    $region12: #{_lambda_.1} parent=5 // pred_fallthru
      _
    %p138 = scmp.lt.s32.totalorder %s9, 4
    // Predicated region
    $region21: #{_lambda_.1} parent=5 // pred_check
      %p139 = pneg %p138
    $region22: #{_lambda_.1} parent=5 // pred_check_branch
      %141 = sbr.rel (%p139) target = $region24
    $region23: #{_lambda_.1} parent=5 // pred_region
      // Predicated region
      $region25: #{_lambda_.1} parent=23 // pred_check
        %p142 = pneg %p41
      $region26: #{_lambda_.1} parent=23 // pred_check_branch
        %144 = sbr.rel (%p142) target = $region28
      $region27: #{_lambda_.1} parent=23 // pred_region
        %p145 = scmp.lt.s32.totalorder %s16, 1
        %s146 = scalar_select %p145, %s16, 1
        %s147 = smul.addr %s146, 54
        %s148 = smul.addr %s147, 4
        %s149 = scalar_lea.vmem %s0, %s148
      $region28: #{_lambda_.1} parent=23 // pred_fallthru
        _
    $region24: #{_lambda_.1} parent=5 // pred_fallthru
      _
    %p150 = scmp.le.s32.totalorder 1, %s9
    %p151 = scmp.lt.s32.totalorder %s9, 5
    %p152 = pnand %p150, %p151
    %p153 = pneg %p152
    // Predicated region
    $region29: #{_lambda_.1} parent=5 // pred_check
      _
    $region30: #{_lambda_.1} parent=5 // pred_check_branch
      %155 = sbr.rel (%p152) target = $region32
    $region31: #{_lambda_.1} parent=5 // pred_region
      %s156 = ssub.s32 %s9, 1
      %p157 = scmp.lt.s32.totalorder %s18, 1
      %s158 = scalar_select %p157, %s18, 1
      %s159 = smul.addr %s158, 54
      %s160 = smul.addr %s159, 4
      %s161 = scalar_lea.vmem %s0, %s160
      %p162 = pneg %p47
      %p163 = pneg %p44
      %p164 = pneg %p68
      %p165 = pneg %p65
      %p166 = pneg %p89
      %p167 = pneg %p86
      %p168 = pneg %p117
      %p169 = pneg %p114
      %s170 = smul.u32 8, %s19
      %p171 = scmp.lt.s32.totalorder %s18, 1
      %s172 = scalar_select %p171, %s18, 1
      %p173 = scmp.lt.s32.totalorder %s170, 15
      %s174 = scalar_select %p173, %s170, 15
      %s175 = smul.addr %s174, 2
      %s176 = smul.addr %s172, 32
      %s177 = sadd.s32 %s175, %s176
      %s178 = smul.addr %s177, 8
      %s179 = scalar_lea.vmem %s3, %s178
      %p180 = scmp.lt.s32.totalorder %s18, 1
      %s181 = scalar_select %p180, %s18, 1
      %s182 = smul.addr %s181, 54
      %s183 = smul.addr %s182, 4
      %s184 = scalar_lea.vmem %s0, %s183
      %s185 = smul.u32 8, %s19
      %p186 = scmp.lt.s32.totalorder %s18, 1
      %s187 = scalar_select %p186, %s18, 1
      %p188 = scmp.lt.s32.totalorder %s185, 15
      %s189 = scalar_select %p188, %s185, 15
      %s190 = smul.addr %s189, 2
      %s191 = smul.addr %s187, 32
      %s192 = sadd.s32 %s190, %s191
      %s193 = smul.addr %s192, 8
      %s194 = scalar_lea.vmem %s3, %s193
      %s195 = smul.u32 8, %s19
      %s197 = smul.u32 %s19, 8
      %v198 = vld [vmem:[%s1] sm:$0x3]
      %s199 = scalar_lea.vmem %s1, 2
      %v200 = vld [vmem:[%s199] sm:$0x3]
      %s201 = scalar_lea.vmem %s1, 4
      %v202 = vld [vmem:[%s201] sm:$0x3]
      %s203 = scalar_lea.vmem %s1, 6
      %v204 = vld [vmem:[%s203] sm:$0x3]
      %s205 = scalar_lea.vmem %s1, 8
      %v206 = vld [vmem:[%s205] sm:$0x3]
      %s207 = scalar_lea.vmem %s1, 10
      %v208 = vld [vmem:[%s207] sm:$0x3]
      %s209 = scalar_lea.vmem %s1, 12
      %v210 = vld [vmem:[%s209] sm:$0x3]
      %s211 = scalar_lea.vmem %s1, 14
      %v212 = vld [vmem:[%s211] sm:$0x3]
      %s213 = scalar_lea.vmem %s1, 16
      %v214 = vld [vmem:[%s213] sm:$0x3]
      %v215 = vld [vmem:[%s2] sm:$0x1]
      loop: start=0, step=1, limit=8
      $region33: #{_lambda_.1} parent=31 // loop_pre_header
        _
      $region34: #{_lambda_.1} parent=31 // loop_header
        %s217 = sphi 0, %s221
        %p218 = scmp.ge.s32.totalorder %s217, 8
      $region35: #{_lambda_.1} parent=31 // loop_header_branch
        %220 = sbr.rel (%p218) target = $region39
      $region36: #{_lambda_.1} parent=31 // loop_body
        %s222 = sadd.s32 %s197, %s217
        %s223 = smul.u32 %s222, 3
        %s224 = smul.addr %s223, 4
        %s225 = scalar_lea.vmem %s184, %s224
        %v226 = vld [vmem:[%s225] sm:$0xf]
        %v227 = vld [vmem:[%s225 + $0x4] sm:$0xf]
        %v228 = vld [vmem:[%s225 + $0x8] sm:$0x1]
        %v232 = vunpack.c.l.b16 %v226
        %v233 = vunpack.c.l.b16 %v227
        %v234 = vunpack.c.l.b16 %v228
        %v235 = vpack.c.b16 %v233, %v232
        %v236 = vpack.c.b16 %v234, %v234
        %vm237 = vsmask.f32 7424
        %v239 = vshrl.u32 %v235, 16
        %v241 = vshll.u32 %v235, 16
        %v243 = vrot.slane %v241, 1
        %v244 = vor.u32 %v239, %v243
        %v246 = vshll.u32 %v236, 16
        %v248 = vrot.slane %v246, 1
        %v249 = vsel %vm237, %v244, %v248
        %vm250 = vcmask 31744
        %v252 = vsel %vm250, %v249, 0
        %vm254 = vcmask 1041408
        %v256 = vsel %vm254, %v200, 0
        %258 = vmatprep.subr.bf16.mxu0 0
        %259 = vmatpush1.bf16.msra.mxu0 0
        %260 = vmatprep.subr.bf16.mxu0 0
        %261 = vmatpush1.bf16.msra.mxu0 0
        %262 = vmatprep.subr.bf16.mxu0 0
        %263 = vmatpush1.bf16.msra.mxu0 0
        %264 = vmatprep.subr.bf16.mxu0 0
        %265 = vmatpush1.bf16.msra.mxu0 0
        %266 = vmatprep.subr.bf16.mxu0 0
        %267 = vmatpush1.bf16.msra.mxu0 0
        %268 = vmatprep.subr.bf16.mxu0 0
        %269 = vmatpush1.bf16.msra.mxu0 0
        %270 = vmatprep.subr.bf16.mxu0 0
        %271 = vmatpush1.bf16.msra.mxu0 0
        %272 = vmatprep.subr.bf16.mxu0 0
        %273 = vmatpush1.bf16.msra.mxu0 %v256
        %274 = vmatprep.subr.bf16.mxu0 0
        %275 = vmatpush2.bf16.msra.mxu0 0
        %276 = vmatprep.subr.bf16.mxu0 0
        %277 = vmatpush2.bf16.msra.mxu0 0
        %278 = vmatprep.subr.bf16.mxu0 0
        %279 = vmatpush2.bf16.msra.mxu0 0
        %280 = vmatprep.subr.bf16.mxu0 0
        %281 = vmatpush2.bf16.msra.mxu0 0
        %282 = vmatprep.subr.bf16.mxu0 0
        %283 = vmatpush2.bf16.msra.mxu0 0
        %284 = vmatprep.subr.bf16.mxu0 0
        %285 = vmatpush2.bf16.msra.mxu0 0
        %286 = vmatprep.subr.bf16.mxu0 0
        %287 = vmatpush2.bf16.msra.mxu0 0
        %288 = vmatprep.subr.bf16.mxu0 0
        %289 = vmatpush2.bf16.msra.mxu0 0
        %290 = vmatprep.mubr.bf16.mxu0 0
        %291 = vmatmul.mubr.bf16.gmra.mxu0 %v252
        %v292 = vpop.f32.mrf.mxu0
        %v293 = vadd.f32 0.0, %v292
        %v294 = vpop.f32.mrf.mxu0
        %v295 = vpop.f32.mrf.mxu0
        %v296 = vadd.f32 0.0, %v295
        %v297 = vpop.f32.mrf.mxu0
        %298 = vdwg.mxu0
        %v299 = vsel %vm250, %v235, 0
        %v302 = vsel %vm254, %v198, 0
        %304 = vmatprep.subr.bf16.mxu0 0
        %305 = vmatpush1.bf16.msra.mxu0 0
        %306 = vmatprep.subr.bf16.mxu0 0
        %307 = vmatpush1.bf16.msra.mxu0 0
        %308 = vmatprep.subr.bf16.mxu0 0
        %309 = vmatpush1.bf16.msra.mxu0 0
        %310 = vmatprep.subr.bf16.mxu0 0
        %311 = vmatpush1.bf16.msra.mxu0 0
        %312 = vmatprep.subr.bf16.mxu0 0
        %313 = vmatpush1.bf16.msra.mxu0 0
        %314 = vmatprep.subr.bf16.mxu0 0
        %315 = vmatpush1.bf16.msra.mxu0 0
        %316 = vmatprep.subr.bf16.mxu0 0
        %317 = vmatpush1.bf16.msra.mxu0 0
        %318 = vmatprep.subr.bf16.mxu0 0
        %319 = vmatpush1.bf16.msra.mxu0 %v302
        %320 = vmatprep.subr.bf16.mxu0 0
        %321 = vmatpush2.bf16.msra.mxu0 0
        %322 = vmatprep.subr.bf16.mxu0 0
        %323 = vmatpush2.bf16.msra.mxu0 0
        %324 = vmatprep.subr.bf16.mxu0 0
        %325 = vmatpush2.bf16.msra.mxu0 0
        %326 = vmatprep.subr.bf16.mxu0 0
        %327 = vmatpush2.bf16.msra.mxu0 0
        %328 = vmatprep.subr.bf16.mxu0 0
        %329 = vmatpush2.bf16.msra.mxu0 0
        %330 = vmatprep.subr.bf16.mxu0 0
        %331 = vmatpush2.bf16.msra.mxu0 0
        %332 = vmatprep.subr.bf16.mxu0 0
        %333 = vmatpush2.bf16.msra.mxu0 0
        %334 = vmatprep.subr.bf16.mxu0 0
        %335 = vmatpush2.bf16.msra.mxu0 0
        %336 = vmatprep.mubr.bf16.mxu0 0
        %337 = vmatmul.mubr.bf16.gmra.mxu0 %v299
        %v338 = vpop.f32.mrf.mxu0
        %v339 = vadd.f32 %v293, %v338
        %v340 = vpop.f32.mrf.mxu0
        %v341 = vpop.f32.mrf.mxu0
        %v342 = vadd.f32 %v296, %v341
        %v343 = vpop.f32.mrf.mxu0
        %344 = vdwg.mxu0
        %v345 = vld [vmem:[%s225] sm:$0xe]
        %v347 = vunpack.c.l.b16 %v345
        %v348 = vpack.c.b16 %v233, %v347
        %vm349 = vcmask 1046528
        %v350 = vrot.slane %v348, 1
        %v351 = vrot.slane %v236, 1
        %v352 = vsel %vm349, %v350, %v351
        %v354 = vsel %vm250, %v352, 0
        %v357 = vsel %vm254, %v202, 0
        %359 = vmatprep.subr.bf16.mxu0 0
        %360 = vmatpush1.bf16.msra.mxu0 0
        %361 = vmatprep.subr.bf16.mxu0 0
        %362 = vmatpush1.bf16.msra.mxu0 0
        %363 = vmatprep.subr.bf16.mxu0 0
        %364 = vmatpush1.bf16.msra.mxu0 0
        %365 = vmatprep.subr.bf16.mxu0 0
        %366 = vmatpush1.bf16.msra.mxu0 0
        %367 = vmatprep.subr.bf16.mxu0 0
        %368 = vmatpush1.bf16.msra.mxu0 0
        %369 = vmatprep.subr.bf16.mxu0 0
        %370 = vmatpush1.bf16.msra.mxu0 0
        %371 = vmatprep.subr.bf16.mxu0 0
        %372 = vmatpush1.bf16.msra.mxu0 0
        %373 = vmatprep.subr.bf16.mxu0 0
        %374 = vmatpush1.bf16.msra.mxu0 %v357
        %375 = vmatprep.subr.bf16.mxu0 0
        %376 = vmatpush2.bf16.msra.mxu0 0
        %377 = vmatprep.subr.bf16.mxu0 0
        %378 = vmatpush2.bf16.msra.mxu0 0
        %379 = vmatprep.subr.bf16.mxu0 0
        %380 = vmatpush2.bf16.msra.mxu0 0
        %381 = vmatprep.subr.bf16.mxu0 0
        %382 = vmatpush2.bf16.msra.mxu0 0
        %383 = vmatprep.subr.bf16.mxu0 0
        %384 = vmatpush2.bf16.msra.mxu0 0
        %385 = vmatprep.subr.bf16.mxu0 0
        %386 = vmatpush2.bf16.msra.mxu0 0
        %387 = vmatprep.subr.bf16.mxu0 0
        %388 = vmatpush2.bf16.msra.mxu0 0
        %389 = vmatprep.subr.bf16.mxu0 0
        %390 = vmatpush2.bf16.msra.mxu0 0
        %391 = vmatprep.mubr.bf16.mxu0 0
        %392 = vmatmul.mubr.bf16.gmra.mxu0 %v354
        %v393 = vpop.f32.mrf.mxu0
        %v394 = vadd.f32 0.0, %v393
        %v395 = vpop.f32.mrf.mxu0
        %v396 = vpop.f32.mrf.mxu0
        %v397 = vadd.f32 0.0, %v396
        %v398 = vpop.f32.mrf.mxu0
        %399 = vdwg.mxu0
        %v400 = vadd.f32 %v339, %v394
        %v401 = vadd.f32 %v342, %v397
        %s402 = sadd.s32 %s222, 1
        %s403 = smul.u32 %s402, 3
        %s404 = smul.addr %s403, 4
        %s405 = scalar_lea.vmem %s184, %s404
        %v406 = vld [vmem:[%s405] sm:$0xf]
        %v407 = vld [vmem:[%s405 + $0x4] sm:$0xf]
        %v410 = vunpack.c.l.b16 %v406
        %v411 = vunpack.c.l.b16 %v407
        %v412 = vpack.c.b16 %v411, %v410
        %v414 = vsel %vm250, %v412, 0
        %v417 = vsel %vm254, %v204, 0
        %419 = vmatprep.subr.bf16.mxu0 0
        %420 = vmatpush1.bf16.msra.mxu0 0
        %421 = vmatprep.subr.bf16.mxu0 0
        %422 = vmatpush1.bf16.msra.mxu0 0
        %423 = vmatprep.subr.bf16.mxu0 0
        %424 = vmatpush1.bf16.msra.mxu0 0
        %425 = vmatprep.subr.bf16.mxu0 0
        %426 = vmatpush1.bf16.msra.mxu0 0
        %427 = vmatprep.subr.bf16.mxu0 0
        %428 = vmatpush1.bf16.msra.mxu0 0
        %429 = vmatprep.subr.bf16.mxu0 0
        %430 = vmatpush1.bf16.msra.mxu0 0
        %431 = vmatprep.subr.bf16.mxu0 0
        %432 = vmatpush1.bf16.msra.mxu0 0
        %433 = vmatprep.subr.bf16.mxu0 0
        %434 = vmatpush1.bf16.msra.mxu0 %v417
        %435 = vmatprep.subr.bf16.mxu0 0
        %436 = vmatpush2.bf16.msra.mxu0 0
        %437 = vmatprep.subr.bf16.mxu0 0
        %438 = vmatpush2.bf16.msra.mxu0 0
        %439 = vmatprep.subr.bf16.mxu0 0
        %440 = vmatpush2.bf16.msra.mxu0 0
        %441 = vmatprep.subr.bf16.mxu0 0
        %442 = vmatpush2.bf16.msra.mxu0 0
        %443 = vmatprep.subr.bf16.mxu0 0
        %444 = vmatpush2.bf16.msra.mxu0 0
        %445 = vmatprep.subr.bf16.mxu0 0
        %446 = vmatpush2.bf16.msra.mxu0 0
        %447 = vmatprep.subr.bf16.mxu0 0
        %448 = vmatpush2.bf16.msra.mxu0 0
        %449 = vmatprep.subr.bf16.mxu0 0
        %450 = vmatpush2.bf16.msra.mxu0 0
        %451 = vmatprep.mubr.bf16.mxu0 0
        %452 = vmatmul.mubr.bf16.gmra.mxu0 %v414
        %v453 = vpop.f32.mrf.mxu0
        %v454 = vadd.f32 0.0, %v453
        %v455 = vpop.f32.mrf.mxu0
        %v456 = vpop.f32.mrf.mxu0
        %v457 = vadd.f32 0.0, %v456
        %v458 = vpop.f32.mrf.mxu0
        %459 = vdwg.mxu0
        %v460 = vadd.f32 %v400, %v454
        %v461 = vadd.f32 %v401, %v457
        %v462 = vld [vmem:[%s405] sm:$0xf]
        %v463 = vld [vmem:[%s405 + $0x4] sm:$0xf]
        %v464 = vld [vmem:[%s405 + $0x8] sm:$0x1]
        %v468 = vunpack.c.l.b16 %v462
        %v469 = vunpack.c.l.b16 %v463
        %v470 = vunpack.c.l.b16 %v464
        %v471 = vpack.c.b16 %v469, %v468
        %v472 = vpack.c.b16 %v470, %v470
        %v474 = vshrl.u32 %v471, 16
        %v476 = vshll.u32 %v471, 16
        %v478 = vrot.slane %v476, 1
        %v479 = vor.u32 %v474, %v478
        %v481 = vshll.u32 %v472, 16
        %v483 = vrot.slane %v481, 1
        %v484 = vsel %vm237, %v479, %v483
        %v486 = vsel %vm250, %v484, 0
        %v489 = vsel %vm254, %v206, 0
        %491 = vmatprep.subr.bf16.mxu0 0
        %492 = vmatpush1.bf16.msra.mxu0 0
        %493 = vmatprep.subr.bf16.mxu0 0
        %494 = vmatpush1.bf16.msra.mxu0 0
        %495 = vmatprep.subr.bf16.mxu0 0
        %496 = vmatpush1.bf16.msra.mxu0 0
        %497 = vmatprep.subr.bf16.mxu0 0
        %498 = vmatpush1.bf16.msra.mxu0 0
        %499 = vmatprep.subr.bf16.mxu0 0
        %500 = vmatpush1.bf16.msra.mxu0 0
        %501 = vmatprep.subr.bf16.mxu0 0
        %502 = vmatpush1.bf16.msra.mxu0 0
        %503 = vmatprep.subr.bf16.mxu0 0
        %504 = vmatpush1.bf16.msra.mxu0 0
        %505 = vmatprep.subr.bf16.mxu0 0
        %506 = vmatpush1.bf16.msra.mxu0 %v489
        %507 = vmatprep.subr.bf16.mxu0 0
        %508 = vmatpush2.bf16.msra.mxu0 0
        %509 = vmatprep.subr.bf16.mxu0 0
        %510 = vmatpush2.bf16.msra.mxu0 0
        %511 = vmatprep.subr.bf16.mxu0 0
        %512 = vmatpush2.bf16.msra.mxu0 0
        %513 = vmatprep.subr.bf16.mxu0 0
        %514 = vmatpush2.bf16.msra.mxu0 0
        %515 = vmatprep.subr.bf16.mxu0 0
        %516 = vmatpush2.bf16.msra.mxu0 0
        %517 = vmatprep.subr.bf16.mxu0 0
        %518 = vmatpush2.bf16.msra.mxu0 0
        %519 = vmatprep.subr.bf16.mxu0 0
        %520 = vmatpush2.bf16.msra.mxu0 0
        %521 = vmatprep.subr.bf16.mxu0 0
        %522 = vmatpush2.bf16.msra.mxu0 0
        %523 = vmatprep.mubr.bf16.mxu0 0
        %524 = vmatmul.mubr.bf16.gmra.mxu0 %v486
        %v525 = vpop.f32.mrf.mxu0
        %v526 = vadd.f32 0.0, %v525
        %v527 = vpop.f32.mrf.mxu0
        %v528 = vpop.f32.mrf.mxu0
        %v529 = vadd.f32 0.0, %v528
        %v530 = vpop.f32.mrf.mxu0
        %531 = vdwg.mxu0
        %v532 = vadd.f32 %v460, %v526
        %v533 = vadd.f32 %v461, %v529
        %v534 = vld [vmem:[%s405] sm:$0xe]
        %v536 = vunpack.c.l.b16 %v534
        %v537 = vpack.c.b16 %v469, %v536
        %v538 = vrot.slane %v537, 1
        %v539 = vrot.slane %v472, 1
        %v540 = vsel %vm349, %v538, %v539
        %v542 = vsel %vm250, %v540, 0
        %v545 = vsel %vm254, %v208, 0
        %547 = vmatprep.subr.bf16.mxu0 0
        %548 = vmatpush1.bf16.msra.mxu0 0
        %549 = vmatprep.subr.bf16.mxu0 0
        %550 = vmatpush1.bf16.msra.mxu0 0
        %551 = vmatprep.subr.bf16.mxu0 0
        %552 = vmatpush1.bf16.msra.mxu0 0
        %553 = vmatprep.subr.bf16.mxu0 0
        %554 = vmatpush1.bf16.msra.mxu0 0
        %555 = vmatprep.subr.bf16.mxu0 0
        %556 = vmatpush1.bf16.msra.mxu0 0
        %557 = vmatprep.subr.bf16.mxu0 0
        %558 = vmatpush1.bf16.msra.mxu0 0
        %559 = vmatprep.subr.bf16.mxu0 0
        %560 = vmatpush1.bf16.msra.mxu0 0
        %561 = vmatprep.subr.bf16.mxu0 0
        %562 = vmatpush1.bf16.msra.mxu0 %v545
        %563 = vmatprep.subr.bf16.mxu0 0
        %564 = vmatpush2.bf16.msra.mxu0 0
        %565 = vmatprep.subr.bf16.mxu0 0
        %566 = vmatpush2.bf16.msra.mxu0 0
        %567 = vmatprep.subr.bf16.mxu0 0
        %568 = vmatpush2.bf16.msra.mxu0 0
        %569 = vmatprep.subr.bf16.mxu0 0
        %570 = vmatpush2.bf16.msra.mxu0 0
        %571 = vmatprep.subr.bf16.mxu0 0
        %572 = vmatpush2.bf16.msra.mxu0 0
        %573 = vmatprep.subr.bf16.mxu0 0
        %574 = vmatpush2.bf16.msra.mxu0 0
        %575 = vmatprep.subr.bf16.mxu0 0
        %576 = vmatpush2.bf16.msra.mxu0 0
        %577 = vmatprep.subr.bf16.mxu0 0
        %578 = vmatpush2.bf16.msra.mxu0 0
        %579 = vmatprep.mubr.bf16.mxu0 0
        %580 = vmatmul.mubr.bf16.gmra.mxu0 %v542
        %v581 = vpop.f32.mrf.mxu0
        %v582 = vadd.f32 0.0, %v581
        %v583 = vpop.f32.mrf.mxu0
        %v584 = vpop.f32.mrf.mxu0
        %v585 = vadd.f32 0.0, %v584
        %v586 = vpop.f32.mrf.mxu0
        %587 = vdwg.mxu0
        %v588 = vadd.f32 %v532, %v582
        %v589 = vadd.f32 %v533, %v585
        %s590 = sadd.s32 %s222, 2
        %s591 = smul.u32 %s590, 3
        %s592 = smul.addr %s591, 4
        %s593 = scalar_lea.vmem %s184, %s592
        %v594 = vld [vmem:[%s593] sm:$0xf]
        %v595 = vld [vmem:[%s593 + $0x4] sm:$0xf]
        %v598 = vunpack.c.l.b16 %v594
        %v599 = vunpack.c.l.b16 %v595
        %v600 = vpack.c.b16 %v599, %v598
        %v602 = vsel %vm250, %v600, 0
        %v605 = vsel %vm254, %v210, 0
        %607 = vmatprep.subr.bf16.mxu0 0
        %608 = vmatpush1.bf16.msra.mxu0 0
        %609 = vmatprep.subr.bf16.mxu0 0
        %610 = vmatpush1.bf16.msra.mxu0 0
        %611 = vmatprep.subr.bf16.mxu0 0
        %612 = vmatpush1.bf16.msra.mxu0 0
        %613 = vmatprep.subr.bf16.mxu0 0
        %614 = vmatpush1.bf16.msra.mxu0 0
        %615 = vmatprep.subr.bf16.mxu0 0
        %616 = vmatpush1.bf16.msra.mxu0 0
        %617 = vmatprep.subr.bf16.mxu0 0
        %618 = vmatpush1.bf16.msra.mxu0 0
        %619 = vmatprep.subr.bf16.mxu0 0
        %620 = vmatpush1.bf16.msra.mxu0 0
        %621 = vmatprep.subr.bf16.mxu0 0
        %622 = vmatpush1.bf16.msra.mxu0 %v605
        %623 = vmatprep.subr.bf16.mxu0 0
        %624 = vmatpush2.bf16.msra.mxu0 0
        %625 = vmatprep.subr.bf16.mxu0 0
        %626 = vmatpush2.bf16.msra.mxu0 0
        %627 = vmatprep.subr.bf16.mxu0 0
        %628 = vmatpush2.bf16.msra.mxu0 0
        %629 = vmatprep.subr.bf16.mxu0 0
        %630 = vmatpush2.bf16.msra.mxu0 0
        %631 = vmatprep.subr.bf16.mxu0 0
        %632 = vmatpush2.bf16.msra.mxu0 0
        %633 = vmatprep.subr.bf16.mxu0 0
        %634 = vmatpush2.bf16.msra.mxu0 0
        %635 = vmatprep.subr.bf16.mxu0 0
        %636 = vmatpush2.bf16.msra.mxu0 0
        %637 = vmatprep.subr.bf16.mxu0 0
        %638 = vmatpush2.bf16.msra.mxu0 0
        %639 = vmatprep.mubr.bf16.mxu0 0
        %640 = vmatmul.mubr.bf16.gmra.mxu0 %v602
        %v641 = vpop.f32.mrf.mxu0
        %v642 = vadd.f32 0.0, %v641
        %v643 = vpop.f32.mrf.mxu0
        %v644 = vpop.f32.mrf.mxu0
        %v645 = vadd.f32 0.0, %v644
        %v646 = vpop.f32.mrf.mxu0
        %647 = vdwg.mxu0
        %v648 = vadd.f32 %v588, %v642
        %v649 = vadd.f32 %v589, %v645
        %v650 = vld [vmem:[%s593] sm:$0xf]
        %v651 = vld [vmem:[%s593 + $0x4] sm:$0xf]
        %v652 = vld [vmem:[%s593 + $0x8] sm:$0x1]
        %v656 = vunpack.c.l.b16 %v650
        %v657 = vunpack.c.l.b16 %v651
        %v658 = vunpack.c.l.b16 %v652
        %v659 = vpack.c.b16 %v657, %v656
        %v660 = vpack.c.b16 %v658, %v658
        %v662 = vshrl.u32 %v659, 16
        %v664 = vshll.u32 %v659, 16
        %v666 = vrot.slane %v664, 1
        %v667 = vor.u32 %v662, %v666
        %v669 = vshll.u32 %v660, 16
        %v671 = vrot.slane %v669, 1
        %v672 = vsel %vm237, %v667, %v671
        %v674 = vsel %vm250, %v672, 0
        %v677 = vsel %vm254, %v212, 0
        %679 = vmatprep.subr.bf16.mxu0 0
        %680 = vmatpush1.bf16.msra.mxu0 0
        %681 = vmatprep.subr.bf16.mxu0 0
        %682 = vmatpush1.bf16.msra.mxu0 0
        %683 = vmatprep.subr.bf16.mxu0 0
        %684 = vmatpush1.bf16.msra.mxu0 0
        %685 = vmatprep.subr.bf16.mxu0 0
        %686 = vmatpush1.bf16.msra.mxu0 0
        %687 = vmatprep.subr.bf16.mxu0 0
        %688 = vmatpush1.bf16.msra.mxu0 0
        %689 = vmatprep.subr.bf16.mxu0 0
        %690 = vmatpush1.bf16.msra.mxu0 0
        %691 = vmatprep.subr.bf16.mxu0 0
        %692 = vmatpush1.bf16.msra.mxu0 0
        %693 = vmatprep.subr.bf16.mxu0 0
        %694 = vmatpush1.bf16.msra.mxu0 %v677
        %695 = vmatprep.subr.bf16.mxu0 0
        %696 = vmatpush2.bf16.msra.mxu0 0
        %697 = vmatprep.subr.bf16.mxu0 0
        %698 = vmatpush2.bf16.msra.mxu0 0
        %699 = vmatprep.subr.bf16.mxu0 0
        %700 = vmatpush2.bf16.msra.mxu0 0
        %701 = vmatprep.subr.bf16.mxu0 0
        %702 = vmatpush2.bf16.msra.mxu0 0
        %703 = vmatprep.subr.bf16.mxu0 0
        %704 = vmatpush2.bf16.msra.mxu0 0
        %705 = vmatprep.subr.bf16.mxu0 0
        %706 = vmatpush2.bf16.msra.mxu0 0
        %707 = vmatprep.subr.bf16.mxu0 0
        %708 = vmatpush2.bf16.msra.mxu0 0
        %709 = vmatprep.subr.bf16.mxu0 0
        %710 = vmatpush2.bf16.msra.mxu0 0
        %711 = vmatprep.mubr.bf16.mxu0 0
        %712 = vmatmul.mubr.bf16.gmra.mxu0 %v674
        %v713 = vpop.f32.mrf.mxu0
        %v714 = vadd.f32 0.0, %v713
        %v715 = vpop.f32.mrf.mxu0
        %v716 = vpop.f32.mrf.mxu0
        %v717 = vadd.f32 0.0, %v716
        %v718 = vpop.f32.mrf.mxu0
        %719 = vdwg.mxu0
        %v720 = vadd.f32 %v648, %v714
        %v721 = vadd.f32 %v649, %v717
        %v722 = vld [vmem:[%s593] sm:$0xe]
        %v724 = vunpack.c.l.b16 %v722
        %v725 = vpack.c.b16 %v657, %v724
        %v726 = vrot.slane %v725, 1
        %v727 = vrot.slane %v660, 1
        %v728 = vsel %vm349, %v726, %v727
        %v730 = vsel %vm250, %v728, 0
        %v733 = vsel %vm254, %v214, 0
        %735 = vmatprep.subr.bf16.mxu0 0
        %736 = vmatpush1.bf16.msra.mxu0 0
        %737 = vmatprep.subr.bf16.mxu0 0
        %738 = vmatpush1.bf16.msra.mxu0 0
        %739 = vmatprep.subr.bf16.mxu0 0
        %740 = vmatpush1.bf16.msra.mxu0 0
        %741 = vmatprep.subr.bf16.mxu0 0
        %742 = vmatpush1.bf16.msra.mxu0 0
        %743 = vmatprep.subr.bf16.mxu0 0
        %744 = vmatpush1.bf16.msra.mxu0 0
        %745 = vmatprep.subr.bf16.mxu0 0
        %746 = vmatpush1.bf16.msra.mxu0 0
        %747 = vmatprep.subr.bf16.mxu0 0
        %748 = vmatpush1.bf16.msra.mxu0 0
        %749 = vmatprep.subr.bf16.mxu0 0
        %750 = vmatpush1.bf16.msra.mxu0 %v733
        %751 = vmatprep.subr.bf16.mxu0 0
        %752 = vmatpush2.bf16.msra.mxu0 0
        %753 = vmatprep.subr.bf16.mxu0 0
        %754 = vmatpush2.bf16.msra.mxu0 0
        %755 = vmatprep.subr.bf16.mxu0 0
        %756 = vmatpush2.bf16.msra.mxu0 0
        %757 = vmatprep.subr.bf16.mxu0 0
        %758 = vmatpush2.bf16.msra.mxu0 0
        %759 = vmatprep.subr.bf16.mxu0 0
        %760 = vmatpush2.bf16.msra.mxu0 0
        %761 = vmatprep.subr.bf16.mxu0 0
        %762 = vmatpush2.bf16.msra.mxu0 0
        %763 = vmatprep.subr.bf16.mxu0 0
        %764 = vmatpush2.bf16.msra.mxu0 0
        %765 = vmatprep.subr.bf16.mxu0 0
        %766 = vmatpush2.bf16.msra.mxu0 0
        %767 = vmatprep.mubr.bf16.mxu0 0
        %768 = vmatmul.mubr.bf16.gmra.mxu0 %v730
        %v769 = vpop.f32.mrf.mxu0
        %v770 = vadd.f32 0.0, %v769
        %v771 = vpop.f32.mrf.mxu0
        %v772 = vpop.f32.mrf.mxu0
        %v773 = vadd.f32 0.0, %v772
        %v774 = vpop.f32.mrf.mxu0
        %775 = vdwg.mxu0
        %v776 = vadd.f32 %v720, %v770
        %v777 = vadd.f32 %v721, %v773
        %v779 = vlaneseq
        %v780 = vshrl.u32 %v779, 7
        %v781 = vsub.s32 0, %v780
        %v782 = vrot.slane %v215, %v781
        %v784 = vadd.f32 %v776, %v782
        %v785 = vadd.f32 %v777, %v782
        %vm786 = vcmp.gt.f32.partialorder %v784, 0.0
        %vm787 = vcmp.gt.f32.partialorder %v785, 0.0
        %v788 = vmul.f32 %v784, 0.1
        %v789 = vmul.f32 %v785, 0.1
        %v790 = vsel %vm786, %v784, %v788
        %v791 = vsel %vm787, %v785, %v789
        %s792 = smul.u32 %s217, 16
        %s793 = scalar_lea.vmem %s194, %s792
        %vm794 = vcmask 64512
        %795 = vst.msk [vmem:[%s793] sm:$0xff] %vm794, %v790
        %796 = vst.msk [vmem:[%s793 + $0x8] sm:$0xff] %vm794, %v791
      $region37: #{_lambda_.1} parent=31 // loop_footer
        %s221 = sadd.s32 1, %s217
      $region38: #{_lambda_.1} parent=31 // loop_footer_branch
        %216 = sbr.rel target = $region34
      $region39: #{_lambda_.1} parent=31 // loop_exit
        _
      %s797 = smul.u32 8, %s19
      %p798 = scmp.lt.s32.totalorder %s18, 1
      %s799 = scalar_select %p798, %s18, 1
      %p800 = scmp.lt.s32.totalorder %s797, 15
      %s801 = scalar_select %p800, %s797, 15
      %s802 = smul.addr %s801, 2
      %s803 = smul.addr %s799, 32
      %s804 = sadd.s32 %s802, %s803
      %s805 = smul.addr %s804, 8
      %s806 = scalar_lea.vmem %s3, %s805
      // Predicated region
      $region40: #{_lambda_.1} parent=31 // pred_check
        %p807 = pneg %p114
      $region41: #{_lambda_.1} parent=31 // pred_check_branch
        %809 = sbr.rel (%p807) target = $region43
      $region42: #{_lambda_.1} parent=31 // pred_region
        %s810 = smul.u32 8, %s19
      $region43: #{_lambda_.1} parent=31 // pred_fallthru
        _
    $region32: #{_lambda_.1} parent=5 // pred_fallthru
      _
    %p811 = scmp.le.s32.totalorder 2, %s9
    // Predicated region
    $region44: #{_lambda_.1} parent=5 // pred_check
      %p812 = pneg %p811
    $region45: #{_lambda_.1} parent=5 // pred_check_branch
      %814 = sbr.rel (%p812) target = $region47
    $region46: #{_lambda_.1} parent=5 // pred_region
      %s815 = ssub.s32 %s9, 2
      // Predicated region
      $region48: #{_lambda_.1} parent=46 // pred_check
        %p816 = pneg %p120
      $region49: #{_lambda_.1} parent=46 // pred_check_branch
        %818 = sbr.rel (%p816) target = $region51
      $region50: #{_lambda_.1} parent=46 // pred_region
        %s819 = smul.u32 8, %s21
        %p820 = scmp.lt.s32.totalorder %s20, 1
        %s821 = scalar_select %p820, %s20, 1
        %p822 = scmp.lt.s32.totalorder %s819, 15
        %s823 = scalar_select %p822, %s819, 15
        %s824 = smul.addr %s823, 2
        %s825 = smul.addr %s821, 32
        %s826 = sadd.s32 %s824, %s825
        %s827 = smul.addr %s826, 8
        %s828 = scalar_lea.vmem %s3, %s827
      $region51: #{_lambda_.1} parent=46 // pred_fallthru
        _
    $region47: #{_lambda_.1} parent=5 // pred_fallthru
      _
  $region6: #{_lambda_.1} parent=0 // loop_footer
    %s13 = sadd.s32 1, %s9
  $region7: #{_lambda_.1} parent=0 // loop_footer_branch
    %8 = sbr.rel target = $region3
  $region8: #{_lambda_.1} parent=0 // loop_exit
    _

</llo_original>
